<compile_context>
chip_gen: v7x
topology: tpu7x:2x2x1
jax: 0.10.0
libtpu: 0.0.40
codegen_flags: <defaults>
</compile_context>

<pallas_src>
import functools
import numpy as np
import jax
import jax.numpy as jnp
from jax.experimental import pallas as pl
from jax.experimental.pallas import tpu as pltpu


def _round_up(x, m):
    return (x + m - 1) // m * m


def _cdiv(a, b):
    return (a + b - 1) // b


def _sublane_multiple(dtype):
    itemsize = np.dtype(dtype).itemsize
    return 8 * max(1, 4 // itemsize)


def _mtloss_kernel(pred_ref, target_ref, out_ref, *, cluster_slices, inv_tc,
                   inv_n_cols, assume_binary):
    """One [T_pad, tb] batch tile -> accumulate 8 per-lane partial statistics.

    Output block (8, tb) f32 (resident across the inner grid axis):
      row 0: sum(pred)            row 4: sum_c csum_c^2 / Tc
      row 1: sum(pred^2)          row 5: sum_b pred_mean_b^2
      row 2: sum(target)          row 6: sum_{b,c} Tc*(pred_mean - c_mean)^2
      row 3: sum(target^2)        row 7: sum of per-element BCE
    """
    i = pl.program_id(1)

    @pl.when(i == 0)
    def _init():
        out_ref[...] = jnp.zeros_like(out_ref)

    pred = pred_ref[...].astype(jnp.float32)     # [T_pad, tb]  (tasks x batch)
    tgt = target_ref[...].astype(jnp.float32)    # [T_pad, tb]

    # Per-cluster segment sums: clusters are contiguous static sublane slices,
    # so each is a sub-block load + sublane (XLU) reduce -> [1, tb].
    csums = []
    for off, size in cluster_slices:
        c_blk = pred_ref[off:off + size, :].astype(jnp.float32)
        csums.append(jnp.sum(c_blk, axis=0, keepdims=True))

    row_sum = csums[0]
    for cs in csums[1:]:
        row_sum = row_sum + cs                                   # [1, tb]
    pred_mean = row_sum * jnp.float32(inv_n_cols)                # [1, tb]

    # within:  sum_{t in c}(p - c_mean)^2 = sum(p^2) - csum^2 / Tc   (per lane)
    # between: Tc * (pred_mean - c_mean)^2                            (per lane)
    within_c = jnp.zeros_like(pred_mean)
    between = jnp.zeros_like(pred_mean)
    for cs, (off, size), itc in zip(csums, cluster_slices, inv_tc):
        c_mean = cs * jnp.float32(itc)
        within_c = within_c + cs * c_mean                        # csum^2 / Tc
        d = pred_mean - c_mean
        between = between + jnp.float32(size) * (d * d)

    meansq = pred_mean * pred_mean

    ss_pred = jnp.sum(pred * pred, axis=0, keepdims=True)        # [1, tb]
    s_tgt = jnp.sum(tgt, axis=0, keepdims=True)                  # [1, tb]

    # BCE data term (torch.nn.BCELoss clamps log at -100).  The clamp is
    # applied BEFORE any multiply so zero-padded rows/lanes contribute exactly 0.
    if assume_binary:
        ss_tgt = s_tgt                      # t^2 == t for {0,1}: skip mul+reduce
        p_sel = jnp.where(tgt > 0.5, pred, 1.0 - pred)
        bce = -jnp.sum(jnp.maximum(jnp.log(p_sel), -100.0),
                       axis=0, keepdims=True)
    else:
        ss_tgt = jnp.sum(tgt * tgt, axis=0, keepdims=True)
        log_p = jnp.maximum(jnp.log(pred), -100.0)
        log_1mp = jnp.maximum(jnp.log(1.0 - pred), -100.0)
        # -(t*log p + (1-t)*log(1-p)) == -(log(1-p) + t*(log p - log(1-p)))
        bce = -jnp.sum(log_1mp + tgt * (log_p - log_1mp),
                       axis=0, keepdims=True)

    out_ref[0:1, :] += row_sum
    out_ref[1:2, :] += ss_pred
    out_ref[2:3, :] += s_tgt
    out_ref[3:4, :] += ss_tgt
    out_ref[4:5, :] += within_c
    out_ref[5:6, :] += meansq
    out_ref[6:7, :] += between
    out_ref[7:8, :] += bce


def mtloss_pallas(pred_list, target, param_list, lamda=1e-8,
                  assume_binary_targets=False, block_cols=None, core_split=2):
    """Pallas implementation of MTLoss.forward.

    pred_list : list of [B, T_c] arrays (post-sigmoid, values in (0,1))
    target    : [B, sum(T_c)] array of labels
    param_list: list of arbitrary-shape arrays (model params for the L1 term)
    assume_binary_targets: single-log BCE fast path, valid only for hard {0,1}
        labels (the default keeps torch.nn.BCELoss soft-label semantics).
    """
    sizes = [int(p.shape[1]) for p in pred_list]
    if any(s <= 0 for s in sizes):
        raise ValueError("every task cluster must be non-empty")

    # Lane-dense layout: tasks on the sublane axis, batch on the 128-lane axis.
    pred_t = jnp.concatenate([jnp.transpose(p) for p in pred_list], axis=0)  # [T, B]
    target_t = jnp.transpose(jnp.asarray(target))                            # [T, B]
    T, B = pred_t.shape
    C = len(pred_list)

    offs = np.concatenate([[0], np.cumsum(sizes)])[:-1]
    cluster_slices = tuple((int(o), int(s)) for o, s in zip(offs, sizes))
    inv_tc = tuple(1.0 / float(s) for s in sizes)

    # L1 over model params — hoisted out of the kernel (plain JAX scalar).
    l1 = jnp.float32(0.0)
    for p in param_list:
        l1 = l1 + jnp.sum(jnp.abs(p.astype(jnp.float32)))

    # Pad T to the dtype-native sublane multiple (zero rows belong to no
    # cluster and contribute exactly 0 to every accumulated statistic).
    sub = max(_sublane_multiple(pred_t.dtype), _sublane_multiple(target_t.dtype))
    T_pad = _round_up(T, sub)

    # dtype-aware batch-tile sizing from the actual VMEM capacity of this chip.
    try:
        vmem_cap = int(pltpu.get_tpu_info().vmem_capacity_bytes)
    except Exception:                       # pragma: no cover - conservative fallback
        vmem_cap = 64 * 1024 * 1024         # v7x-sized
    itemsize = max(pred_t.dtype.itemsize, target_t.dtype.itemsize)
    if block_cols is None:
        budget = min(8 * 1024 * 1024, max(1024 * 1024, vmem_cap // 12))
        tb = budget // (itemsize * T_pad)
    else:
        tb = int(block_cols)
    tb = max(128, (tb // 128) * 128)
    tb = min(tb, _round_up(B, 128))

    num_blocks = _cdiv(B, tb)
    n_split = max(1, min(int(core_split), num_blocks))   # v7x: 2 TC partials
    bps = _cdiv(num_blocks, n_split)                     # blocks per split
    b_pad = n_split * bps * tb

    if (T_pad != T) or (b_pad != B):
        pred_t = jnp.pad(pred_t, ((0, T_pad - T), (0, b_pad - B)))
        target_t = jnp.pad(target_t, ((0, T_pad - T), (0, b_pad - B)))

    tile_bytes = T_pad * tb * itemsize
    need = 4 * tile_bytes + 2 * 8 * tb * 4 + (2 << 20)   # 2 inputs x 2 bufs + out
    vmem_limit = int(min(vmem_cap - (4 << 20), max(need, 32 << 20)))

    kernel = functools.partial(
        _mtloss_kernel,
        cluster_slices=cluster_slices,
        inv_tc=inv_tc,
        inv_n_cols=1.0 / float(T),
        assume_binary=bool(assume_binary_targets),
    )

    flops = 12 * T_pad * b_pad
    transcendentals = (1 if assume_binary_targets else 2) * T_pad * b_pad
    bytes_accessed = (pred_t.size * pred_t.dtype.itemsize
                      + target_t.size * target_t.dtype.itemsize
                      + n_split * 8 * tb * 4)

    partials = pl.pallas_call(
        kernel,
        out_shape=jax.ShapeDtypeStruct((n_split * 8, tb), jnp.float32),
        grid_spec=pltpu.PrefetchScalarGridSpec(
            num_scalar_prefetch=0,
            grid=(n_split, bps),
            in_specs=[
                pl.BlockSpec((T_pad, tb), lambda s, i: (0, s * bps + i)),   # pred
                pl.BlockSpec((T_pad, tb), lambda s, i: (0, s * bps + i)),   # target
            ],
            # One resident partial-accumulator block per split (core).
            out_specs=pl.BlockSpec((8, tb), lambda s, i: (s, 0)),
        ),
        compiler_params=pltpu.CompilerParams(
            dimension_semantics=("parallel", "arbitrary"),
            vmem_limit_bytes=vmem_limit),
        cost_estimate=pl.CostEstimate(
            flops=flops, transcendentals=transcendentals,
            bytes_accessed=bytes_accessed),
    )(pred_t, target_t)

    # Tiny scalar epilogue in plain JAX: combine the per-core/per-lane partials.
    stats = jnp.sum(partials.reshape(n_split, 8, tb), axis=(0, 2))
    s_p, ss_p, s_t, ss_t = stats[0], stats[1], stats[2], stats[3]
    within_csq, meansq_s, between_s, bce_s = stats[4], stats[5], stats[6], stats[7]

    n = jnp.float32(B * T)
    b = jnp.float32(B)
    within = (ss_p - within_csq) / n
    mean_loss = meansq_s / b
    between = between_s / (b * jnp.float32(C))
    bce = bce_s / n
    # torch.var default: unbiased over all elements (one-pass form).
    var_t = (ss_t - s_t * s_t / n) / (n - 1.0)
    var_p = (ss_p - s_p * s_p / n) / (n - 1.0)
    var_loss = var_t - var_p

    lam = jnp.float32(lamda)
    return (bce + lam * l1 + lam * var_loss + 100.0 * lam * within
            + 10.0 * lam * between + lam * mean_loss)


def mtloss_ref(pred_list, target, param_list, lamda=1e-8):
    """Pure-JAX reference mirroring the PyTorch module exactly."""
    l1 = sum(jnp.sum(jnp.abs(p)) for p in param_list)
    within_l, c_means, tcs = [], [], []
    for c in pred_list:
        t_c = c.shape[-1]
        tcs.append(t_c)
        c_mean = c.mean(1)
        c_means.append(c_mean)
        for idx in range(t_c):
            within_l.append(jnp.mean((c_mean - c[:, idx]) ** 2))
    within = jnp.mean(jnp.stack(within_l))
    pred = jnp.concatenate(pred_list, axis=1)
    pred_mean = pred.mean(1)
    mean_loss = jnp.mean(pred_mean ** 2)
    between = jnp.mean(jnp.stack(
        [t_c * jnp.mean((pred_mean - cm) ** 2) for cm, t_c in zip(c_means, tcs)]))
    var_loss = jnp.var(target, ddof=1) - jnp.var(pred, ddof=1)
    bce = jnp.mean(-(target * jnp.maximum(jnp.log(pred), -100.0)
                     + (1 - target) * jnp.maximum(jnp.log(1 - pred), -100.0)))
    return (bce + lamda * l1 + lamda * var_loss + 100 * lamda * within
            + 10 * lamda * between + lamda * mean_loss)


if __name__ == "__main__":
    key = jax.random.PRNGKey(0)
    kp1, kp2, kt, kw1, kb1, kw2, kb2, kp3, kp4, kt2 = jax.random.split(key, 10)

    # ---- small case: B=16, two task clusters (3, 5) -> T=8 ------------------
    B = 16
    cluster_sizes = (3, 5)
    T = sum(cluster_sizes)

    logits1 = jax.random.normal(kp1, (B, cluster_sizes[0]), dtype=jnp.float32)
    logits2 = jax.random.normal(kp2, (B, cluster_sizes[1]), dtype=jnp.float32)
    pred_list = [jax.nn.sigmoid(logits1), jax.nn.sigmoid(logits2)]
    target = (jax.random.uniform(kt, (B, T)) > 0.5).astype(jnp.float32)

    # deterministic synthetic "model parameters" for the L1 term
    param_list = [
        0.1 * jax.random.normal(kw1, (32, 16), dtype=jnp.float32),
        0.1 * jax.random.normal(kb1, (16,), dtype=jnp.float32),
        0.1 * jax.random.normal(kw2, (16, 8), dtype=jnp.float32),
        0.1 * jax.random.normal(kb2, (8,), dtype=jnp.float32),
    ]

    ref = jax.block_until_ready(mtloss_ref(pred_list, target, param_list, lamda=1e-8))

    # 1) general (soft-label-safe) BCE path, auto-sized single tile.
    loss_general = jax.block_until_ready(
        mtloss_pallas(pred_list, target, param_list, lamda=1e-8,
                      assume_binary_targets=False))
    np.testing.assert_allclose(np.asarray(loss_general), np.asarray(ref),
                               rtol=2e-3, atol=1e-5)

    # 2) binary-target fast path (single log, ss_t == s_t).
    loss_binary = jax.block_until_ready(
        mtloss_pallas(pred_list, target, param_list, lamda=1e-8,
                      assume_binary_targets=True))
    np.testing.assert_allclose(np.asarray(loss_binary), np.asarray(ref),
                               rtol=2e-3, atol=1e-5)

    # ---- larger case exercising multi-block accumulation + core split -------
    # B=384 with block_cols=128 -> 3 batch blocks -> grid (2 splits, 2 blocks),
    # including zero-padded batch lanes in the last block.
    B2 = 384
    logits3 = jax.random.normal(kp3, (B2, cluster_sizes[0]), dtype=jnp.float32)
    logits4 = jax.random.normal(kp4, (B2, cluster_sizes[1]), dtype=jnp.float32)
    pred_list2 = [jax.nn.sigmoid(logits3), jax.nn.sigmoid(logits4)]
    target2 = (jax.random.uniform(kt2, (B2, T)) > 0.5).astype(jnp.float32)

    ref2 = jax.block_until_ready(mtloss_ref(pred_list2, target2, param_list, lamda=1e-8))
    loss2 = jax.block_until_ready(
        mtloss_pallas(pred_list2, target2, param_list, lamda=1e-8,
                      assume_binary_targets=False, block_cols=128))
    np.testing.assert_allclose(np.asarray(loss2), np.asarray(ref2),
                               rtol=2e-3, atol=1e-5)

    print("KERNEL_OK")
</pallas_src>

<mosaic_0001>
module attributes {stable_mosaic.version = 11 : i64} {
  func.func @_mtloss_kernel(%arg0: i32, %arg1: i32, %arg2: memref<8x128xf32, #tpu.memory_space<vmem>>, %arg3: memref<8x128xf32, #tpu.memory_space<vmem>>, %arg4: memref<8x128xf32, #tpu.memory_space<vmem>>) attributes {dimension_semantics = [#tpu.dimension_semantics<parallel>, #tpu.dimension_semantics<arbitrary>], iteration_bounds = array<i64: 1, 1>, scalar_prefetch = 0 : i64, scratch_operands = 0 : i64, tpu.core_type = #tpu.core_type<tc>, window_params = [{transform_indices = @transform_0, window_bounds = array<i64: 8, 128>}, {transform_indices = @transform_1, window_bounds = array<i64: 8, 128>}, {transform_indices = @transform_2, window_bounds = array<i64: 8, 128>}]} {
    %c0_i32 = arith.constant 0 : i32
    %0 = arith.cmpi eq, %arg1, %c0_i32 : i32
    %1 = arith.extui %0 : i1 to i32
    %c0_i32_0 = arith.constant 0 : i32
    %2 = arith.cmpi ne, %1, %c0_i32_0 : i32
    scf.if %2 {
      %cst_49 = arith.constant 0.000000e+00 : f32
      %82 = vector.broadcast %cst_49 : f32 to vector<8x128xf32>
      %c0_50 = arith.constant 0 : index
      %c0_51 = arith.constant 0 : index
      %83 = vector.load %arg4[%c0_50, %c0_51] : memref<8x128xf32, #tpu.memory_space<vmem>>, vector<8x128xf32>
      tpu.vector_store %arg4[%c0_50, %c0_51], %82 {strides = array<i32>} : memref<8x128xf32, #tpu.memory_space<vmem>>, vector<8x128xf32>,
    } else {
    }
    %c0 = arith.constant 0 : index
    %c0_1 = arith.constant 0 : index
    %3 = vector.load %arg2[%c0, %c0_1] : memref<8x128xf32, #tpu.memory_space<vmem>>, vector<8x128xf32>
    %c0_2 = arith.constant 0 : index
    %c0_3 = arith.constant 0 : index
    %4 = vector.load %arg3[%c0_2, %c0_3] : memref<8x128xf32, #tpu.memory_space<vmem>>, vector<8x128xf32>
    %c0_4 = arith.constant 0 : index
    %c0_5 = arith.constant 0 : index
    %5 = vector.load %arg2[%c0_4, %c0_5] : memref<8x128xf32, #tpu.memory_space<vmem>>, vector<3x128xf32>
    %cst = arith.constant dense<0.000000e+00> : vector<128xf32>
    %6 = vector.multi_reduction <add>, %5, %cst [0] : vector<3x128xf32> to vector<128xf32>
    %7 = vector.shape_cast %6 : vector<128xf32> to vector<1x128xf32>
    %c3 = arith.constant 3 : index
    %c0_6 = arith.constant 0 : index
    %8 = vector.load %arg2[%c3, %c0_6] : memref<8x128xf32, #tpu.memory_space<vmem>>, vector<5x128xf32>
    %cst_7 = arith.constant dense<0.000000e+00> : vector<128xf32>
    %9 = vector.multi_reduction <add>, %8, %cst_7 [0] : vector<5x128xf32> to vector<128xf32>
    %10 = vector.shape_cast %9 : vector<128xf32> to vector<1x128xf32>
    %11 = arith.addf %7, %10 : vector<1x128xf32>
    %cst_8 = arith.constant 1.250000e-01 : f32
    %12 = vector.broadcast %cst_8 : f32 to vector<1x128xf32>
    %13 = arith.mulf %11, %12 : vector<1x128xf32>
    %cst_9 = arith.constant 0.000000e+00 : f32
    %14 = vector.broadcast %cst_9 : f32 to vector<1x128xf32>
    %cst_10 = arith.constant 0.000000e+00 : f32
    %15 = vector.broadcast %cst_10 : f32 to vector<1x128xf32>
    %cst_11 = arith.constant 0.333333343 : f32
    %16 = vector.broadcast %cst_11 : f32 to vector<1x128xf32>
    %17 = arith.mulf %7, %16 : vector<1x128xf32>
    %18 = arith.mulf %7, %17 : vector<1x128xf32>
    %19 = arith.addf %14, %18 : vector<1x128xf32>
    %20 = arith.subf %13, %17 : vector<1x128xf32>
    %21 = arith.mulf %20, %20 : vector<1x128xf32>
    %cst_12 = arith.constant 3.000000e+00 : f32
    %22 = vector.broadcast %cst_12 : f32 to vector<1x128xf32>
    %23 = arith.mulf %22, %21 : vector<1x128xf32>
    %24 = arith.addf %15, %23 : vector<1x128xf32>
    %cst_13 = arith.constant 2.000000e-01 : f32
    %25 = vector.broadcast %cst_13 : f32 to vector<1x128xf32>
    %26 = arith.mulf %10, %25 : vector<1x128xf32>
    %27 = arith.mulf %10, %26 : vector<1x128xf32>
    %28 = arith.addf %19, %27 : vector<1x128xf32>
    %29 = arith.subf %13, %26 : vector<1x128xf32>
    %30 = arith.mulf %29, %29 : vector<1x128xf32>
    %cst_14 = arith.constant 5.000000e+00 : f32
    %31 = vector.broadcast %cst_14 : f32 to vector<1x128xf32>
    %32 = arith.mulf %31, %30 : vector<1x128xf32>
    %33 = arith.addf %24, %32 : vector<1x128xf32>
    %34 = arith.mulf %13, %13 : vector<1x128xf32>
    %35 = arith.mulf %3, %3 : vector<8x128xf32>
    %cst_15 = arith.constant dense<0.000000e+00> : vector<128xf32>
    %36 = vector.multi_reduction <add>, %35, %cst_15 [0] : vector<8x128xf32> to vector<128xf32>
    %37 = vector.shape_cast %36 : vector<128xf32> to vector<1x128xf32>
    %cst_16 = arith.constant dense<0.000000e+00> : vector<128xf32>
    %38 = vector.multi_reduction <add>, %4, %cst_16 [0] : vector<8x128xf32> to vector<128xf32>
    %39 = vector.shape_cast %38 : vector<128xf32> to vector<1x128xf32>
    %40 = arith.mulf %4, %4 : vector<8x128xf32>
    %cst_17 = arith.constant dense<0.000000e+00> : vector<128xf32>
    %41 = vector.multi_reduction <add>, %40, %cst_17 [0] : vector<8x128xf32> to vector<128xf32>
    %42 = vector.shape_cast %41 : vector<128xf32> to vector<1x128xf32>
    %43 = math.log %3 : vector<8x128xf32>
    %cst_18 = arith.constant -1.000000e+02 : f32
    %44 = vector.broadcast %cst_18 : f32 to vector<8x128xf32>
    %45 = arith.maximumf %43, %44 : vector<8x128xf32>
    %cst_19 = arith.constant 1.000000e+00 : f32
    %46 = vector.broadcast %cst_19 : f32 to vector<8x128xf32>
    %47 = arith.subf %46, %3 : vector<8x128xf32>
    %48 = math.log %47 : vector<8x128xf32>
    %cst_20 = arith.constant -1.000000e+02 : f32
    %49 = vector.broadcast %cst_20 : f32 to vector<8x128xf32>
    %50 = arith.maximumf %48, %49 : vector<8x128xf32>
    %51 = arith.subf %45, %50 : vector<8x128xf32>
    %52 = arith.mulf %4, %51 : vector<8x128xf32>
    %53 = arith.addf %50, %52 : vector<8x128xf32>
    %cst_21 = arith.constant dense<0.000000e+00> : vector<128xf32>
    %54 = vector.multi_reduction <add>, %53, %cst_21 [0] : vector<8x128xf32> to vector<128xf32>
    %55 = vector.shape_cast %54 : vector<128xf32> to vector<1x128xf32>
    %cst_22 = arith.constant 0.000000e+00 : f32
    %56 = vector.broadcast %cst_22 : f32 to vector<1x128xf32>
    %57 = arith.subf %56, %55 : vector<1x128xf32>
    %c0_23 = arith.constant 0 : index
    %c0_24 = arith.constant 0 : index
    %58 = vector.load %arg4[%c0_23, %c0_24] : memref<8x128xf32, #tpu.memory_space<vmem>>, vector<1x128xf32>
    %59 = arith.addf %58, %11 : vector<1x128xf32>
    %c0_25 = arith.constant 0 : index
    %c0_26 = arith.constant 0 : index
    %60 = vector.load %arg4[%c0_25, %c0_26] : memref<8x128xf32, #tpu.memory_space<vmem>>, vector<1x128xf32>
    tpu.vector_store %arg4[%c0_25, %c0_26], %59 {strides = array<i32>} : memref<8x128xf32, #tpu.memory_space<vmem>>, vector<1x128xf32>,
    %c1 = arith.constant 1 : index
    %c0_27 = arith.constant 0 : index
    %61 = vector.load %arg4[%c1, %c0_27] : memref<8x128xf32, #tpu.memory_space<vmem>>, vector<1x128xf32>
    %62 = arith.addf %61, %37 : vector<1x128xf32>
    %c1_28 = arith.constant 1 : index
    %c0_29 = arith.constant 0 : index
    %63 = vector.load %arg4[%c1_28, %c0_29] : memref<8x128xf32, #tpu.memory_space<vmem>>, vector<1x128xf32>
    tpu.vector_store %arg4[%c1_28, %c0_29], %62 {strides = array<i32>} : memref<8x128xf32, #tpu.memory_space<vmem>>, vector<1x128xf32>,
    %c2 = arith.constant 2 : index
    %c0_30 = arith.constant 0 : index
    %64 = vector.load %arg4[%c2, %c0_30] : memref<8x128xf32, #tpu.memory_space<vmem>>, vector<1x128xf32>
    %65 = arith.addf %64, %39 : vector<1x128xf32>
    %c2_31 = arith.constant 2 : index
    %c0_32 = arith.constant 0 : index
    %66 = vector.load %arg4[%c2_31, %c0_32] : memref<8x128xf32, #tpu.memory_space<vmem>>, vector<1x128xf32>
    tpu.vector_store %arg4[%c2_31, %c0_32], %65 {strides = array<i32>} : memref<8x128xf32, #tpu.memory_space<vmem>>, vector<1x128xf32>,
    %c3_33 = arith.constant 3 : index
    %c0_34 = arith.constant 0 : index
    %67 = vector.load %arg4[%c3_33, %c0_34] : memref<8x128xf32, #tpu.memory_space<vmem>>, vector<1x128xf32>
    %68 = arith.addf %67, %42 : vector<1x128xf32>
    %c3_35 = arith.constant 3 : index
    %c0_36 = arith.constant 0 : index
    %69 = vector.load %arg4[%c3_35, %c0_36] : memref<8x128xf32, #tpu.memory_space<vmem>>, vector<1x128xf32>
    tpu.vector_store %arg4[%c3_35, %c0_36], %68 {strides = array<i32>} : memref<8x128xf32, #tpu.memory_space<vmem>>, vector<1x128xf32>,
    %c4 = arith.constant 4 : index
    %c0_37 = arith.constant 0 : index
    %70 = vector.load %arg4[%c4, %c0_37] : memref<8x128xf32, #tpu.memory_space<vmem>>, vector<1x128xf32>
    %71 = arith.addf %70, %28 : vector<1x128xf32>
    %c4_38 = arith.constant 4 : index
    %c0_39 = arith.constant 0 : index
    %72 = vector.load %arg4[%c4_38, %c0_39] : memref<8x128xf32, #tpu.memory_space<vmem>>, vector<1x128xf32>
    tpu.vector_store %arg4[%c4_38, %c0_39], %71 {strides = array<i32>} : memref<8x128xf32, #tpu.memory_space<vmem>>, vector<1x128xf32>,
    %c5 = arith.constant 5 : index
    %c0_40 = arith.constant 0 : index
    %73 = vector.load %arg4[%c5, %c0_40] : memref<8x128xf32, #tpu.memory_space<vmem>>, vector<1x128xf32>
    %74 = arith.addf %73, %34 : vector<1x128xf32>
    %c5_41 = arith.constant 5 : index
    %c0_42 = arith.constant 0 : index
    %75 = vector.load %arg4[%c5_41, %c0_42] : memref<8x128xf32, #tpu.memory_space<vmem>>, vector<1x128xf32>
    tpu.vector_store %arg4[%c5_41, %c0_42], %74 {strides = array<i32>} : memref<8x128xf32, #tpu.memory_space<vmem>>, vector<1x128xf32>,
    %c6 = arith.constant 6 : index
    %c0_43 = arith.constant 0 : index
    %76 = vector.load %arg4[%c6, %c0_43] : memref<8x128xf32, #tpu.memory_space<vmem>>, vector<1x128xf32>
    %77 = arith.addf %76, %33 : vector<1x128xf32>
    %c6_44 = arith.constant 6 : index
    %c0_45 = arith.constant 0 : index
    %78 = vector.load %arg4[%c6_44, %c0_45] : memref<8x128xf32, #tpu.memory_space<vmem>>, vector<1x128xf32>
    tpu.vector_store %arg4[%c6_44, %c0_45], %77 {strides = array<i32>} : memref<8x128xf32, #tpu.memory_space<vmem>>, vector<1x128xf32>,
    %c7 = arith.constant 7 : index
    %c0_46 = arith.constant 0 : index
    %79 = vector.load %arg4[%c7, %c0_46] : memref<8x128xf32, #tpu.memory_space<vmem>>, vector<1x128xf32>
    %80 = arith.addf %79, %57 : vector<1x128xf32>
    %c7_47 = arith.constant 7 : index
    %c0_48 = arith.constant 0 : index
    %81 = vector.load %arg4[%c7_47, %c0_48] : memref<8x128xf32, #tpu.memory_space<vmem>>, vector<1x128xf32>
    tpu.vector_store %arg4[%c7_47, %c0_48], %80 {strides = array<i32>} : memref<8x128xf32, #tpu.memory_space<vmem>>, vector<1x128xf32>,
    return
  }
  func.func @transform_0(%arg0: i32, %arg1: i32) -> (i32, i32) {
    %c1_i32 = arith.constant 1 : i32
    %0 = arith.muli %arg0, %c1_i32 : i32
    %1 = arith.addi %0, %arg1 : i32
    %c0_i32 = arith.constant 0 : i32
    %c0_i32_0 = arith.constant 0 : i32
    return %c0_i32, %1 : i32, i32
  }
  func.func @transform_1(%arg0: i32, %arg1: i32) -> (i32, i32) {
    %c1_i32 = arith.constant 1 : i32
    %0 = arith.muli %arg0, %c1_i32 : i32
    %1 = arith.addi %0, %arg1 : i32
    %c0_i32 = arith.constant 0 : i32
    %c0_i32_0 = arith.constant 0 : i32
    return %c0_i32, %1 : i32, i32
  }
  func.func @transform_2(%arg0: i32, %arg1: i32) -> (i32, i32) {
    %c0_i32 = arith.constant 0 : i32
    %c0_i32_0 = arith.constant 0 : i32
    return %arg0, %c0_i32 : i32, i32
  }
}

</mosaic_0001>

<llo_original>
// kernel: tpu_custom_call.1
$region0: #{tpu_custom_call.1}
  #allocation0 [shape = 'u32[]', space=smem, size = 0x4, offset = 0x4, fixed_abs, tag = 'smem constant byte address 0x4 - core index']
  #allocation1 [shape = 'u32[144,128]{1,0:T(1,128)}', space=vmem, size = 0x12000, scoped, tag = 'internal scratch']
  %s0 = inlined_call_operand.hbm [shape: f32[8,128], index: 0, kind: input, shape index: {}]
  %s1 = inlined_call_operand.hbm [shape: f32[8,128], index: 1, kind: input, shape index: {}]
  %s2 = inlined_call_operand.hbm [shape: f32[8,128], index: 2, kind: output, shape index: {}]
  %s3 = sld [smem:[#allocation0]]
  $region30: #{tpu_custom_call.1} parent=0
    _
  %s5 = ssub.s32 1, %s3
  %s6 = scalar_select 0, %s5, %s3
  $region1: #{tpu_custom_call.1} parent=0
    #allocation2 [shape = 'u8[4096]{0}', space=vmem, size = 0x1000, scoped, tag = 'input window, operand 0, single buffered']
    #allocation3 [shape = 's32[1]{0}', space=sflag, size = 0x4, scoped, tag = 'scoped memory for tpu_custom_call.1']
    #allocation4 [shape = 's32[1]{0}', space=sflag, size = 0x4, scoped, tag = 'scoped memory for tpu_custom_call.1']
    #allocation5 [shape = 'u8[4096]{0}', space=vmem, size = 0x1000, scoped, tag = 'input window, operand 1, single buffered']
    #allocation6 [shape = 's32[1]{0}', space=sflag, size = 0x4, scoped, tag = 'scoped memory for tpu_custom_call.1']
    #allocation7 [shape = 'u8[4096]{0}', space=vmem, size = 0x1000, scoped, tag = 'output window, operand 0, single buffered']
    %7 = vsyncpa [#allocation3], 0
    %8 = vsyncpa [#allocation6], 0
    %9 = vsyncpa [#allocation4], 0
    // Predicated region
    $region2: #{tpu_custom_call.1} parent=1 // pred_check
      _
    $region3: #{tpu_custom_call.1} parent=1 // pred_check_branch
      %11 = sbr.rel (0) target = $region5
    $region4: #{tpu_custom_call.1} parent=1 // pred_region
      %s12 = sadd.s32 0, 0
      %s14 = ssub.s32 128, 128
      %15 = vsyncadd [#allocation3], %s14
      %s16 = smul.addr %s12, 128
      %s17 = scalar_lea.hbm %s0, %s16
      %s19 = sshll.u32 [#allocation2], 4
      %s20 = int_to_ptr.vmem [resolvable:$true] %s19
      %22 = dma.hbm_to_vmem [thread:$0]  %s17, 128, %s20, [#allocation3]
    $region5: #{tpu_custom_call.1} parent=1 // pred_fallthru
      _
    // Predicated region
    $region6: #{tpu_custom_call.1} parent=1 // pred_check
      _
    $region7: #{tpu_custom_call.1} parent=1 // pred_check_branch
      %24 = sbr.rel (0) target = $region9
    $region8: #{tpu_custom_call.1} parent=1 // pred_region
      %s25 = sadd.s32 0, 0
      %s27 = ssub.s32 128, 128
      %28 = vsyncadd [#allocation6], %s27
      %s29 = smul.addr %s25, 128
      %s30 = scalar_lea.hbm %s1, %s29
      %s32 = sshll.u32 [#allocation5], 4
      %s33 = int_to_ptr.vmem [resolvable:$true] %s32
      %35 = dma.hbm_to_vmem [thread:$0]  %s30, 128, %s33, [#allocation6]
    $region9: #{tpu_custom_call.1} parent=1 // pred_fallthru
      _
    // Predicated region
    $region10: #{tpu_custom_call.1} parent=1 // pred_check
      _
    $region11: #{tpu_custom_call.1} parent=1 // pred_check_branch
      %37 = sbr.rel (0) target = $region13
    $region12: #{tpu_custom_call.1} parent=1 // pred_region
      %38 = dma.done [#allocation3], 128
    $region13: #{tpu_custom_call.1} parent=1 // pred_fallthru
      _
    // Predicated region
    $region14: #{tpu_custom_call.1} parent=1 // pred_check
      _
    $region15: #{tpu_custom_call.1} parent=1 // pred_check_branch
      %40 = sbr.rel (0) target = $region17
    $region16: #{tpu_custom_call.1} parent=1 // pred_region
      %41 = dma.done [#allocation6], 128
    $region17: #{tpu_custom_call.1} parent=1 // pred_fallthru
      _
    %s42 = sadd.s32 0, 0
    %s43 = sadd.s32 0, 0
    %p44 = scmp.eq.s32.totalorder 0, 0
    // Predicated region
    $region18: #{tpu_custom_call.1} parent=1 // pred_check
      %p45 = pneg %p44
    $region19: #{tpu_custom_call.1} parent=1 // pred_check_branch
      %47 = sbr.rel (%p45) target = $region21
    $region20: #{tpu_custom_call.1} parent=1 // pred_region
      %48 = vst [vmem:[#allocation7] sm:$0xff] 0.0
    $region21: #{tpu_custom_call.1} parent=1 // pred_fallthru
      _
    %v49 = vld [vmem:[#allocation2] sm:$0xff]
    %v50 = vld [vmem:[#allocation5] sm:$0xff]
    %v51 = vld [vmem:[#allocation2] sm:$0x7]
    %vm52 = vcmask 1042432
    %v53 = vsel %vm52, %v51, 0.0
    %v54 = vrot.slane %v53, 4
    %v55 = vadd.f32 %v53, %v54
    %v56 = vrot.slane %v55, 2
    %v57 = vadd.f32 %v55, %v56
    %v58 = vrot.slane %v57, 1
    %v59 = vadd.f32 %v57, %v58
    %v60 = vld [vmem:[#allocation2 + $0x3] sm:$0x1f]
    %vm61 = vcmask 1044480
    %v62 = vsel %vm61, %v60, 0.0
    %v63 = vrot.slane %v62, 4
    %v64 = vadd.f32 %v62, %v63
    %v65 = vrot.slane %v64, 2
    %v66 = vadd.f32 %v64, %v65
    %v67 = vrot.slane %v66, 1
    %v68 = vadd.f32 %v66, %v67
    %v69 = vadd.f32 %v59, %v68
    %v70 = vmul.f32 %v69, 0.125
    %v71 = vmul.f32 %v59, 0.33333334
    %v72 = vmul.f32 %v59, %v71
    %v73 = vadd.f32 %v72, 0.0
    %v74 = vsub.f32 %v70, %v71
    %v75 = vmul.f32 %v74, %v74
    %v76 = vmul.f32 %v75, 3.0
    %v77 = vadd.f32 %v76, 0.0
    %v78 = vmul.f32 %v68, 0.2
    %v79 = vmul.f32 %v68, %v78
    %v80 = vadd.f32 %v73, %v79
    %v81 = vsub.f32 %v70, %v78
    %v82 = vmul.f32 %v81, %v81
    %v83 = vmul.f32 %v82, 5.0
    %v84 = vadd.f32 %v77, %v83
    %v85 = vmul.f32 %v70, %v70
    %v86 = vmul.f32 %v49, %v49
    %v87 = vrot.slane %v86, 4
    %v88 = vadd.f32 %v86, %v87
    %v89 = vrot.slane %v88, 2
    %v90 = vadd.f32 %v88, %v89
    %v91 = vrot.slane %v90, 1
    %v92 = vadd.f32 %v90, %v91
    %v93 = vrot.slane %v50, 4
    %v94 = vadd.f32 %v50, %v93
    %v95 = vrot.slane %v94, 2
    %v96 = vadd.f32 %v94, %v95
    %v97 = vrot.slane %v96, 1
    %v98 = vadd.f32 %v96, %v97
    %v99 = vmul.f32 %v50, %v50
    %v100 = vrot.slane %v99, 4
    %v101 = vadd.f32 %v99, %v100
    %v102 = vrot.slane %v101, 2
    %v103 = vadd.f32 %v101, %v102
    %v104 = vrot.slane %v103, 1
    %v105 = vadd.f32 %v103, %v104
    %v106 = vlog2.pop %v49
    %v107 = vmul.f32 %v106, 0.6931472
    %v108 = vmax.f32 %v107, -100.0
    %v109 = vsub.f32 1.0, %v49
    %v110 = vlog2.pop %v109
    %v111 = vmul.f32 %v110, 0.6931472
    %v112 = vmax.f32 %v111, -100.0
    %v113 = vsub.f32 %v108, %v112
    %v114 = vmul.f32 %v50, %v113
    %v115 = vadd.f32 %v112, %v114
    %v116 = vrot.slane %v115, 4
    %v117 = vadd.f32 %v115, %v116
    %v118 = vrot.slane %v117, 2
    %v119 = vadd.f32 %v117, %v118
    %v120 = vrot.slane %v119, 1
    %v121 = vadd.f32 %v119, %v120
    %v122 = vsub.f32 0.0, %v121
    %v123 = vld [vmem:[#allocation7] sm:$0x1]
    %v124 = vadd.f32 %v123, %v69
    %125 = vst [vmem:[#allocation7] sm:$0x1] %v124
    %v126 = vld [vmem:[#allocation7 + $0x1] sm:$0x1]
    %v127 = vadd.f32 %v126, %v92
    %128 = vst [vmem:[#allocation7 + $0x1] sm:$0x1] %v127
    %v129 = vld [vmem:[#allocation7 + $0x2] sm:$0x1]
    %v130 = vadd.f32 %v129, %v98
    %131 = vst [vmem:[#allocation7 + $0x2] sm:$0x1] %v130
    %v132 = vld [vmem:[#allocation7 + $0x3] sm:$0x1]
    %v133 = vadd.f32 %v132, %v105
    %134 = vst [vmem:[#allocation7 + $0x3] sm:$0x1] %v133
    %v135 = vld [vmem:[#allocation7 + $0x4] sm:$0x1]
    %v136 = vadd.f32 %v135, %v80
    %137 = vst [vmem:[#allocation7 + $0x4] sm:$0x1] %v136
    %v138 = vld [vmem:[#allocation7 + $0x5] sm:$0x1]
    %v139 = vadd.f32 %v138, %v85
    %140 = vst [vmem:[#allocation7 + $0x5] sm:$0x1] %v139
    %v141 = vld [vmem:[#allocation7 + $0x6] sm:$0x1]
    %v142 = vadd.f32 %v141, %v84
    %143 = vst [vmem:[#allocation7 + $0x6] sm:$0x1] %v142
    %v144 = vld [vmem:[#allocation7 + $0x7] sm:$0x1]
    %v145 = vadd.f32 %v144, %v122
    %146 = vst [vmem:[#allocation7 + $0x7] sm:$0x1] %v145
    // Predicated region
    $region22: #{tpu_custom_call.1} parent=1 // pred_check
      _
    $region23: #{tpu_custom_call.1} parent=1 // pred_check_branch
      %148 = sbr.rel (0) target = $region25
    $region24: #{tpu_custom_call.1} parent=1 // pred_region
      %s150 = ssub.s32 128, 128
      %151 = vsyncadd [#allocation4], %s150
      %s153 = sshll.u32 [#allocation7], 4
      %s154 = int_to_ptr.vmem [resolvable:$true] %s153
      %156 = dma.vmem_to_hbm [thread:$0]  %s154, 128, %s2, [#allocation4]
    $region25: #{tpu_custom_call.1} parent=1 // pred_fallthru
      _
    // Predicated region
    $region26: #{tpu_custom_call.1} parent=1 // pred_check
      _
    $region27: #{tpu_custom_call.1} parent=1 // pred_check_branch
      %158 = sbr.rel (0) target = $region29
    $region28: #{tpu_custom_call.1} parent=1 // pred_region
      %159 = dma.done [#allocation4], 128
    $region29: #{tpu_custom_call.1} parent=1 // pred_fallthru
      _
    %160 = vsyncpa [#allocation3], 1
    %161 = vsyncpa [#allocation6], 1
    %162 = vsyncpa [#allocation4], 1

</llo_original>
